<compile_context>
chip_gen: v7x
topology: tpu7x:2x2x1
jax: 0.10.0
libtpu: 0.0.40
codegen_flags: <defaults>
</compile_context>

<pallas_src>
import functools

import jax
import jax.numpy as jnp
from jax import lax
from jax.experimental import pallas as pl
from jax.experimental.pallas import tpu as pltpu


_LANE = 512           # lane-dense slab width (multiple of 128)
_MAX_ROW_BLOCK = 256  # rows per grid step (sublane-dim block)


def _mix32(x):
    # lowbias32 finalizer: good avalanche, pure 32-bit VPU integer ops.
    x = x ^ (x >> 16)
    x = x * jnp.uint32(0x7FEB352D)
    x = x ^ (x >> 15)
    x = x * jnp.uint32(0x846CA68B)
    x = x ^ (x >> 16)
    return x


def _random_bits(counter, key):
    # Two mixing rounds with the key injected twice -> per-key stream.
    x = _mix32(counter ^ key)
    x = _mix32(x + key)
    return x


def _bits_to_unit_float(bits):
    # Exponent bit-trick: top 23 bits fill the mantissa of [1,2), subtract 1.
    fbits = (bits >> 9) | jnp.uint32(0x3F800000)
    return lax.bitcast_convert_type(fbits, jnp.float32) - 1.0


def _gaussian_noise_kernel(seed_ref, x_ref, o_ref, *, stddev):
    rows, lane = x_ref.shape
    half = rows // 2

    # Unique per-element counter across the whole (tiled) array, so every grid
    # step / core draws decorrelated noise from the same seed.
    base_row = pl.program_id(0) * half
    r_idx = lax.broadcasted_iota(jnp.int32, (half, lane), 0)
    c_idx = lax.broadcasted_iota(jnp.int32, (half, lane), 1)
    counter = ((base_row + r_idx) * lane + c_idx).astype(jnp.uint32)

    seed = seed_ref[0].astype(jnp.uint32)
    key1 = _mix32(seed ^ jnp.uint32(0x85EBCA6B))
    key2 = _mix32(seed ^ jnp.uint32(0xC2B2AE35))

    u1 = 1.0 - _bits_to_unit_float(_random_bits(counter, key1))  # (0, 1]
    u2 = _bits_to_unit_float(_random_bits(counter, key2))        # [0, 1)

    # Box-Muller using BOTH branches: one log+sqrt pair feeds two output rows.
    r = jnp.sqrt(-2.0 * jnp.log(u1))
    theta = jnp.float32(6.283185307179586) * u2
    zc = r * jnp.cos(theta)
    zs = r * jnp.sin(theta)

    scale = jnp.float32(stddev)
    o_ref[0:half, :] = (
        x_ref[0:half, :].astype(jnp.float32) + zc * scale
    ).astype(o_ref.dtype)
    o_ref[half:rows, :] = (
        x_ref[half:rows, :].astype(jnp.float32) + zs * scale
    ).astype(o_ref.dtype)


def gaussian_noise(x, stddev, seed=0, training=True):
    """Forward pass of GaussianNoise: out = x + N(0, stddev^2) noise (training)."""
    if not training:
        # Eval mode: identity (matches the PyTorch module).
        return x

    orig_shape = x.shape
    total = x.size

    # Flatten to a lane-dense (rows, _LANE) slab; pad the tail if needed.
    rows = -(-total // _LANE)
    if rows >= _MAX_ROW_BLOCK:
        row_blk = _MAX_ROW_BLOCK
    else:
        row_blk = max(8, ((rows + 7) // 8) * 8)
    rows_padded = -(-rows // row_blk) * row_blk
    padded_total = rows_padded * _LANE

    xf = jnp.ravel(x)
    if padded_total != total:
        xf = jnp.pad(xf, (0, padded_total - total))
    x2 = xf.reshape(rows_padded, _LANE)

    seed_arr = jnp.asarray([seed], dtype=jnp.int32)
    grid = (rows_padded // row_blk,)

    out2 = pl.pallas_call(
        functools.partial(_gaussian_noise_kernel, stddev=float(stddev)),
        out_shape=jax.ShapeDtypeStruct(x2.shape, x.dtype),
        grid=grid,
        in_specs=[
            pl.BlockSpec(memory_space=pltpu.MemorySpace.SMEM),   # seed scalar
            pl.BlockSpec((row_blk, _LANE), lambda i: (i, 0)),    # x tile
        ],
        out_specs=pl.BlockSpec((row_blk, _LANE), lambda i: (i, 0)),
        compiler_params=pltpu.CompilerParams(
            dimension_semantics=("parallel",),
            vmem_limit_bytes=32 * 1024 * 1024,
        ),
    )(seed_arr, x2)

    return out2.reshape(-1)[:total].reshape(orig_shape)


if __name__ == "__main__":
    key = jax.random.PRNGKey(0)
    x = jax.random.normal(key, (2, 4, 16, 16), dtype=jnp.float32)
    stddev = 0.1

    # Training mode: x + noise
    y = jax.block_until_ready(gaussian_noise(x, stddev, seed=0, training=True))
    assert y.shape == x.shape and y.dtype == x.dtype
    noise = y - x
    noise_std = float(jnp.std(noise))
    noise_mean = float(jnp.mean(noise))
    assert float(jnp.max(jnp.abs(noise))) > 0.0
    assert 0.05 < noise_std < 0.2, f"noise std {noise_std} not ~{stddev}"
    assert abs(noise_mean) < 0.03, f"noise mean {noise_mean} not ~0"

    # Different seeds -> different noise realizations.
    y2 = jax.block_until_ready(gaussian_noise(x, stddev, seed=1, training=True))
    assert float(jnp.max(jnp.abs(y2 - y))) > 0.0

    # Eval mode: identity
    y_eval = jax.block_until_ready(gaussian_noise(x, stddev, seed=0, training=False))
    assert bool(jnp.all(y_eval == x))

    print("KERNEL_OK")
</pallas_src>

<mosaic_0001>
module attributes {stable_mosaic.version = 11 : i64} {
  func.func @_gaussian_noise_kernel(%arg0: i32, %arg1: memref<1xi32, #tpu.memory_space<smem>>, %arg2: memref<8x512xf32, #tpu.memory_space<vmem>>, %arg3: memref<8x512xf32, #tpu.memory_space<vmem>>) attributes {dimension_semantics = [#tpu.dimension_semantics<parallel>], iteration_bounds = array<i64: 1>, scalar_prefetch = 0 : i64, scratch_operands = 0 : i64, tpu.core_type = #tpu.core_type<tc>, window_params = [{transform_indices = @transform_0, window_bounds = array<i64: 1>}, {transform_indices = @transform_1, window_bounds = array<i64: 8, 512>}, {transform_indices = @transform_2, window_bounds = array<i64: 8, 512>}]} {
    %c4_i32 = arith.constant 4 : i32
    %0 = arith.muli %arg0, %c4_i32 : i32
    %1 = tpu.iota {dimensions = array<i32: 0>} : vector<4x512xi32>
    %2 = tpu.iota {dimensions = array<i32: 1>} : vector<4x512xi32>
    %3 = vector.broadcast %0 : i32 to vector<4x512xi32>
    %4 = arith.addi %3, %1 : vector<4x512xi32>
    %c512_i32 = arith.constant 512 : i32
    %5 = vector.broadcast %c512_i32 : i32 to vector<4x512xi32>
    %6 = arith.muli %4, %5 : vector<4x512xi32>
    %7 = arith.addi %6, %2 : vector<4x512xi32>
    %c0 = arith.constant 0 : index
    %8 = memref.load %arg1[%c0] : memref<1xi32, #tpu.memory_space<smem>>
    %c-2048144789_i32 = arith.constant -2048144789 : i32
    %9 = arith.xori %8, %c-2048144789_i32 : i32
    %c16_i32 = arith.constant 16 : i32
    %10 = arith.shrui %9, %c16_i32 : i32
    %11 = arith.xori %9, %10 : i32
    %c2146121005_i32 = arith.constant 2146121005 : i32
    %12 = arith.muli %11, %c2146121005_i32 : i32
    %c15_i32 = arith.constant 15 : i32
    %13 = arith.shrui %12, %c15_i32 : i32
    %14 = arith.xori %12, %13 : i32
    %c-2073254261_i32 = arith.constant -2073254261 : i32
    %15 = arith.muli %14, %c-2073254261_i32 : i32
    %c16_i32_0 = arith.constant 16 : i32
    %16 = arith.shrui %15, %c16_i32_0 : i32
    %17 = arith.xori %15, %16 : i32
    %c-1028477387_i32 = arith.constant -1028477387 : i32
    %18 = arith.xori %8, %c-1028477387_i32 : i32
    %c16_i32_1 = arith.constant 16 : i32
    %19 = arith.shrui %18, %c16_i32_1 : i32
    %20 = arith.xori %18, %19 : i32
    %c2146121005_i32_2 = arith.constant 2146121005 : i32
    %21 = arith.muli %20, %c2146121005_i32_2 : i32
    %c15_i32_3 = arith.constant 15 : i32
    %22 = arith.shrui %21, %c15_i32_3 : i32
    %23 = arith.xori %21, %22 : i32
    %c-2073254261_i32_4 = arith.constant -2073254261 : i32
    %24 = arith.muli %23, %c-2073254261_i32_4 : i32
    %c16_i32_5 = arith.constant 16 : i32
    %25 = arith.shrui %24, %c16_i32_5 : i32
    %26 = arith.xori %24, %25 : i32
    %27 = vector.broadcast %17 : i32 to vector<4x512xi32>
    %28 = arith.xori %7, %27 : vector<4x512xi32>
    %c16_i32_6 = arith.constant 16 : i32
    %29 = vector.broadcast %c16_i32_6 : i32 to vector<4x512xi32>
    %30 = arith.shrui %28, %29 : vector<4x512xi32>
    %31 = arith.xori %28, %30 : vector<4x512xi32>
    %c2146121005_i32_7 = arith.constant 2146121005 : i32
    %32 = vector.broadcast %c2146121005_i32_7 : i32 to vector<4x512xi32>
    %33 = arith.muli %31, %32 : vector<4x512xi32>
    %c15_i32_8 = arith.constant 15 : i32
    %34 = vector.broadcast %c15_i32_8 : i32 to vector<4x512xi32>
    %35 = arith.shrui %33, %34 : vector<4x512xi32>
    %36 = arith.xori %33, %35 : vector<4x512xi32>
    %c-2073254261_i32_9 = arith.constant -2073254261 : i32
    %37 = vector.broadcast %c-2073254261_i32_9 : i32 to vector<4x512xi32>
    %38 = arith.muli %36, %37 : vector<4x512xi32>
    %c16_i32_10 = arith.constant 16 : i32
    %39 = vector.broadcast %c16_i32_10 : i32 to vector<4x512xi32>
    %40 = arith.shrui %38, %39 : vector<4x512xi32>
    %41 = arith.xori %38, %40 : vector<4x512xi32>
    %42 = vector.broadcast %17 : i32 to vector<4x512xi32>
    %43 = arith.addi %41, %42 : vector<4x512xi32>
    %c16_i32_11 = arith.constant 16 : i32
    %44 = vector.broadcast %c16_i32_11 : i32 to vector<4x512xi32>
    %45 = arith.shrui %43, %44 : vector<4x512xi32>
    %46 = arith.xori %43, %45 : vector<4x512xi32>
    %c2146121005_i32_12 = arith.constant 2146121005 : i32
    %47 = vector.broadcast %c2146121005_i32_12 : i32 to vector<4x512xi32>
    %48 = arith.muli %46, %47 : vector<4x512xi32>
    %c15_i32_13 = arith.constant 15 : i32
    %49 = vector.broadcast %c15_i32_13 : i32 to vector<4x512xi32>
    %50 = arith.shrui %48, %49 : vector<4x512xi32>
    %51 = arith.xori %48, %50 : vector<4x512xi32>
    %c-2073254261_i32_14 = arith.constant -2073254261 : i32
    %52 = vector.broadcast %c-2073254261_i32_14 : i32 to vector<4x512xi32>
    %53 = arith.muli %51, %52 : vector<4x512xi32>
    %c16_i32_15 = arith.constant 16 : i32
    %54 = vector.broadcast %c16_i32_15 : i32 to vector<4x512xi32>
    %55 = arith.shrui %53, %54 : vector<4x512xi32>
    %56 = arith.xori %53, %55 : vector<4x512xi32>
    %c9_i32 = arith.constant 9 : i32
    %57 = vector.broadcast %c9_i32 : i32 to vector<4x512xi32>
    %58 = arith.shrui %56, %57 : vector<4x512xi32>
    %c1065353216_i32 = arith.constant 1065353216 : i32
    %59 = vector.broadcast %c1065353216_i32 : i32 to vector<4x512xi32>
    %60 = arith.ori %58, %59 : vector<4x512xi32>
    %61 = tpu.bitcast %60 : vector<4x512xi32> -> vector<4x512xf32>
    %cst = arith.constant 1.000000e+00 : f32
    %62 = vector.broadcast %cst : f32 to vector<4x512xf32>
    %63 = arith.subf %61, %62 : vector<4x512xf32>
    %cst_16 = arith.constant 1.000000e+00 : f32
    %64 = vector.broadcast %cst_16 : f32 to vector<4x512xf32>
    %65 = arith.subf %64, %63 : vector<4x512xf32>
    %66 = vector.broadcast %26 : i32 to vector<4x512xi32>
    %67 = arith.xori %7, %66 : vector<4x512xi32>
    %c16_i32_17 = arith.constant 16 : i32
    %68 = vector.broadcast %c16_i32_17 : i32 to vector<4x512xi32>
    %69 = arith.shrui %67, %68 : vector<4x512xi32>
    %70 = arith.xori %67, %69 : vector<4x512xi32>
    %c2146121005_i32_18 = arith.constant 2146121005 : i32
    %71 = vector.broadcast %c2146121005_i32_18 : i32 to vector<4x512xi32>
    %72 = arith.muli %70, %71 : vector<4x512xi32>
    %c15_i32_19 = arith.constant 15 : i32
    %73 = vector.broadcast %c15_i32_19 : i32 to vector<4x512xi32>
    %74 = arith.shrui %72, %73 : vector<4x512xi32>
    %75 = arith.xori %72, %74 : vector<4x512xi32>
    %c-2073254261_i32_20 = arith.constant -2073254261 : i32
    %76 = vector.broadcast %c-2073254261_i32_20 : i32 to vector<4x512xi32>
    %77 = arith.muli %75, %76 : vector<4x512xi32>
    %c16_i32_21 = arith.constant 16 : i32
    %78 = vector.broadcast %c16_i32_21 : i32 to vector<4x512xi32>
    %79 = arith.shrui %77, %78 : vector<4x512xi32>
    %80 = arith.xori %77, %79 : vector<4x512xi32>
    %81 = vector.broadcast %26 : i32 to vector<4x512xi32>
    %82 = arith.addi %80, %81 : vector<4x512xi32>
    %c16_i32_22 = arith.constant 16 : i32
    %83 = vector.broadcast %c16_i32_22 : i32 to vector<4x512xi32>
    %84 = arith.shrui %82, %83 : vector<4x512xi32>
    %85 = arith.xori %82, %84 : vector<4x512xi32>
    %c2146121005_i32_23 = arith.constant 2146121005 : i32
    %86 = vector.broadcast %c2146121005_i32_23 : i32 to vector<4x512xi32>
    %87 = arith.muli %85, %86 : vector<4x512xi32>
    %c15_i32_24 = arith.constant 15 : i32
    %88 = vector.broadcast %c15_i32_24 : i32 to vector<4x512xi32>
    %89 = arith.shrui %87, %88 : vector<4x512xi32>
    %90 = arith.xori %87, %89 : vector<4x512xi32>
    %c-2073254261_i32_25 = arith.constant -2073254261 : i32
    %91 = vector.broadcast %c-2073254261_i32_25 : i32 to vector<4x512xi32>
    %92 = arith.muli %90, %91 : vector<4x512xi32>
    %c16_i32_26 = arith.constant 16 : i32
    %93 = vector.broadcast %c16_i32_26 : i32 to vector<4x512xi32>
    %94 = arith.shrui %92, %93 : vector<4x512xi32>
    %95 = arith.xori %92, %94 : vector<4x512xi32>
    %c9_i32_27 = arith.constant 9 : i32
    %96 = vector.broadcast %c9_i32_27 : i32 to vector<4x512xi32>
    %97 = arith.shrui %95, %96 : vector<4x512xi32>
    %c1065353216_i32_28 = arith.constant 1065353216 : i32
    %98 = vector.broadcast %c1065353216_i32_28 : i32 to vector<4x512xi32>
    %99 = arith.ori %97, %98 : vector<4x512xi32>
    %100 = tpu.bitcast %99 : vector<4x512xi32> -> vector<4x512xf32>
    %cst_29 = arith.constant 1.000000e+00 : f32
    %101 = vector.broadcast %cst_29 : f32 to vector<4x512xf32>
    %102 = arith.subf %100, %101 : vector<4x512xf32>
    %103 = math.log %65 : vector<4x512xf32>
    %cst_30 = arith.constant -2.000000e+00 : f32
    %104 = vector.broadcast %cst_30 : f32 to vector<4x512xf32>
    %105 = arith.mulf %104, %103 : vector<4x512xf32>
    %106 = math.sqrt %105 : vector<4x512xf32>
    %cst_31 = arith.constant 6.28318548 : f32
    %107 = vector.broadcast %cst_31 : f32 to vector<4x512xf32>
    %108 = arith.mulf %107, %102 : vector<4x512xf32>
    %109 = math.cos %108 : vector<4x512xf32>
    %110 = arith.mulf %106, %109 : vector<4x512xf32>
    %111 = math.sin %108 : vector<4x512xf32>
    %112 = arith.mulf %106, %111 : vector<4x512xf32>
    %c0_32 = arith.constant 0 : index
    %c0_33 = arith.constant 0 : index
    %113 = vector.load %arg2[%c0_32, %c0_33] : memref<8x512xf32, #tpu.memory_space<vmem>>, vector<4x512xf32>
    %cst_34 = arith.constant 1.000000e-01 : f32
    %114 = vector.broadcast %cst_34 : f32 to vector<4x512xf32>
    %115 = arith.mulf %110, %114 : vector<4x512xf32>
    %116 = arith.addf %113, %115 : vector<4x512xf32>
    %c0_35 = arith.constant 0 : index
    %c0_36 = arith.constant 0 : index
    %117 = vector.load %arg3[%c0_35, %c0_36] : memref<8x512xf32, #tpu.memory_space<vmem>>, vector<4x512xf32>
    tpu.vector_store %arg3[%c0_35, %c0_36], %116 {strides = array<i32>} : memref<8x512xf32, #tpu.memory_space<vmem>>, vector<4x512xf32>,
    %c4 = arith.constant 4 : index
    %c0_37 = arith.constant 0 : index
    %118 = vector.load %arg2[%c4, %c0_37] : memref<8x512xf32, #tpu.memory_space<vmem>>, vector<4x512xf32>
    %cst_38 = arith.constant 1.000000e-01 : f32
    %119 = vector.broadcast %cst_38 : f32 to vector<4x512xf32>
    %120 = arith.mulf %112, %119 : vector<4x512xf32>
    %121 = arith.addf %118, %120 : vector<4x512xf32>
    %c4_39 = arith.constant 4 : index
    %c0_40 = arith.constant 0 : index
    %122 = vector.load %arg3[%c4_39, %c0_40] : memref<8x512xf32, #tpu.memory_space<vmem>>, vector<4x512xf32>
    tpu.vector_store %arg3[%c4_39, %c0_40], %121 {strides = array<i32>} : memref<8x512xf32, #tpu.memory_space<vmem>>, vector<4x512xf32>,
    return
  }
  func.func @transform_0(%arg0: i32) -> i32 {
    %c0_i32 = arith.constant 0 : i32
    %c0_i32_0 = arith.constant 0 : i32
    return %c0_i32 : i32
  }
  func.func @transform_1(%arg0: i32) -> (i32, i32) {
    %c0_i32 = arith.constant 0 : i32
    %c0_i32_0 = arith.constant 0 : i32
    return %arg0, %c0_i32 : i32, i32
  }
  func.func @transform_2(%arg0: i32) -> (i32, i32) {
    %c0_i32 = arith.constant 0 : i32
    %c0_i32_0 = arith.constant 0 : i32
    return %arg0, %c0_i32 : i32, i32
  }
}

</mosaic_0001>

<llo_original>
// kernel: tpu_custom_call.1
$region0: #{tpu_custom_call.1}
  #allocation0 [shape = 'u32[]', space=smem, size = 0x4, offset = 0x4, fixed_abs, tag = 'smem constant byte address 0x4 - core index']
  #allocation1 [shape = 'u32[144,128]{1,0:T(1,128)}', space=vmem, size = 0x12000, scoped, tag = 'internal scratch']
  #allocation2 [shape = 's32[1]{0:T(128)S(6)}', space=smem, size = 0x200, scoped, tag = 'scoped memory for tpu_custom_call.1']
  %s0 = inlined_call_operand.<no memory space> [shape: s32[1], index: 0, kind: input, shape index: {}]
  %s1 = inlined_call_operand.hbm [shape: f32[8,512], index: 1, kind: input, shape index: {}]
  %s2 = inlined_call_operand.hbm [shape: f32[8,512], index: 2, kind: output, shape index: {}]
  %s3 = sld [smem:[#allocation0]]
  $region22: #{tpu_custom_call.1} parent=0
    _
  %s5 = ssub.s32 1, %s3
  %s6 = scalar_select 0, %s5, %s3
  %7 = sst [smem:[#allocation2]] %s0
  $region1: #{tpu_custom_call.1} parent=0
    #allocation3 [shape = 'u8[16384]{0}', space=vmem, size = 0x4000, scoped, tag = 'input window, operand 1, single buffered']
    #allocation4 [shape = 's32[1]{0}', space=sflag, size = 0x4, scoped, tag = 'scoped memory for tpu_custom_call.1']
    #allocation5 [shape = 's32[1]{0}', space=sflag, size = 0x4, scoped, tag = 'scoped memory for tpu_custom_call.1']
    #allocation6 [shape = 'u8[16384]{0}', space=vmem, size = 0x4000, scoped, tag = 'output window, operand 0, single buffered']
    %8 = vsyncpa [#allocation4], 0
    %9 = vsyncpa [#allocation5], 0
    // Predicated region
    $region2: #{tpu_custom_call.1} parent=1 // pred_check
      _
    $region3: #{tpu_custom_call.1} parent=1 // pred_check_branch
      %11 = sbr.rel (0) target = $region5
    $region4: #{tpu_custom_call.1} parent=1 // pred_region
      _
    $region5: #{tpu_custom_call.1} parent=1 // pred_fallthru
      _
    // Predicated region
    $region6: #{tpu_custom_call.1} parent=1 // pred_check
      _
    $region7: #{tpu_custom_call.1} parent=1 // pred_check_branch
      %13 = sbr.rel (0) target = $region9
    $region8: #{tpu_custom_call.1} parent=1 // pred_region
      %s15 = ssub.s32 512, 512
      %16 = vsyncadd [#allocation4], %s15
      %s18 = sshll.u32 [#allocation3], 4
      %s19 = int_to_ptr.vmem [resolvable:$true] %s18
      %21 = dma.hbm_to_vmem [thread:$0]  %s1, 512, %s19, [#allocation4]
    $region9: #{tpu_custom_call.1} parent=1 // pred_fallthru
      _
    // Predicated region
    $region10: #{tpu_custom_call.1} parent=1 // pred_check
      _
    $region11: #{tpu_custom_call.1} parent=1 // pred_check_branch
      %23 = sbr.rel (0) target = $region13
    $region12: #{tpu_custom_call.1} parent=1 // pred_region
      %24 = dma.done [#allocation4], 512
    $region13: #{tpu_custom_call.1} parent=1 // pred_fallthru
      _
    %s25 = smul.u32 0, 4
    %v26 = vlaneseq
    %v27 = vshrl.u32 %v26, 7
    %v28 = vlaneseq
    %v29 = vand.u32 %v28, 127
    %v30 = vadd.s32 %v29, 128
    %v31 = vadd.s32 %v29, 256
    %v32 = vadd.s32 %v29, 384
    %v33 = vstv %s25
    %v34 = vadd.s32 %v33, %v27
    %v35 = vmul.u32 %v34, 512
    %v36 = vadd.s32 %v35, %v29
    %v37 = vadd.s32 %v35, %v30
    %v38 = vadd.s32 %v35, %v31
    %v39 = vadd.s32 %v35, %v32
    %s40 = sld [smem:[#allocation2]]
    %s41 = sxor.u32 %s40, 2246822507
    %s42 = sshrl.u32 %s41, 16
    %s43 = sxor.u32 %s41, %s42
    %s44 = smul.u32 %s43, 2146121005
    %s45 = sshrl.u32 %s44, 15
    %s46 = sxor.u32 %s44, %s45
    %s47 = smul.u32 %s46, 2221713035
    %s48 = sshrl.u32 %s47, 16
    %s49 = sxor.u32 %s47, %s48
    %s50 = sxor.u32 %s40, 3266489909
    %s51 = sshrl.u32 %s50, 16
    %s52 = sxor.u32 %s50, %s51
    %s53 = smul.u32 %s52, 2146121005
    %s54 = sshrl.u32 %s53, 15
    %s55 = sxor.u32 %s53, %s54
    %s56 = smul.u32 %s55, 2221713035
    %s57 = sshrl.u32 %s56, 16
    %s58 = sxor.u32 %s56, %s57
    %v59 = vstv %s49
    %v60 = vxor.u32 %v36, %v59
    %v61 = vxor.u32 %v37, %v59
    %v62 = vxor.u32 %v38, %v59
    %v63 = vxor.u32 %v39, %v59
    %v64 = vshrl.u32 %v60, 16
    %v65 = vshrl.u32 %v61, 16
    %v66 = vshrl.u32 %v62, 16
    %v67 = vshrl.u32 %v63, 16
    %v68 = vxor.u32 %v60, %v64
    %v69 = vxor.u32 %v61, %v65
    %v70 = vxor.u32 %v62, %v66
    %v71 = vxor.u32 %v63, %v67
    %v72 = vmul.u32 %v68, 2146121005
    %v73 = vmul.u32 %v69, 2146121005
    %v74 = vmul.u32 %v70, 2146121005
    %v75 = vmul.u32 %v71, 2146121005
    %v76 = vshrl.u32 %v72, 15
    %v77 = vshrl.u32 %v73, 15
    %v78 = vshrl.u32 %v74, 15
    %v79 = vshrl.u32 %v75, 15
    %v80 = vxor.u32 %v72, %v76
    %v81 = vxor.u32 %v73, %v77
    %v82 = vxor.u32 %v74, %v78
    %v83 = vxor.u32 %v75, %v79
    %v84 = vmul.u32 %v80, 2221713035
    %v85 = vmul.u32 %v81, 2221713035
    %v86 = vmul.u32 %v82, 2221713035
    %v87 = vmul.u32 %v83, 2221713035
    %v88 = vshrl.u32 %v84, 16
    %v89 = vshrl.u32 %v85, 16
    %v90 = vshrl.u32 %v86, 16
    %v91 = vshrl.u32 %v87, 16
    %v92 = vxor.u32 %v84, %v88
    %v93 = vxor.u32 %v85, %v89
    %v94 = vxor.u32 %v86, %v90
    %v95 = vxor.u32 %v87, %v91
    %v96 = vadd.s32 %v92, %v59
    %v97 = vadd.s32 %v93, %v59
    %v98 = vadd.s32 %v94, %v59
    %v99 = vadd.s32 %v95, %v59
    %v100 = vshrl.u32 %v96, 16
    %v101 = vshrl.u32 %v97, 16
    %v102 = vshrl.u32 %v98, 16
    %v103 = vshrl.u32 %v99, 16
    %v104 = vxor.u32 %v96, %v100
    %v105 = vxor.u32 %v97, %v101
    %v106 = vxor.u32 %v98, %v102
    %v107 = vxor.u32 %v99, %v103
    %v108 = vmul.u32 %v104, 2146121005
    %v109 = vmul.u32 %v105, 2146121005
    %v110 = vmul.u32 %v106, 2146121005
    %v111 = vmul.u32 %v107, 2146121005
    %v112 = vshrl.u32 %v108, 15
    %v113 = vshrl.u32 %v109, 15
    %v114 = vshrl.u32 %v110, 15
    %v115 = vshrl.u32 %v111, 15
    %v116 = vxor.u32 %v108, %v112
    %v117 = vxor.u32 %v109, %v113
    %v118 = vxor.u32 %v110, %v114
    %v119 = vxor.u32 %v111, %v115
    %v120 = vmul.u32 %v116, 2221713035
    %v121 = vmul.u32 %v117, 2221713035
    %v122 = vmul.u32 %v118, 2221713035
    %v123 = vmul.u32 %v119, 2221713035
    %v124 = vshrl.u32 %v120, 16
    %v125 = vshrl.u32 %v121, 16
    %v126 = vshrl.u32 %v122, 16
    %v127 = vshrl.u32 %v123, 16
    %v128 = vxor.u32 %v120, %v124
    %v129 = vxor.u32 %v121, %v125
    %v130 = vxor.u32 %v122, %v126
    %v131 = vxor.u32 %v123, %v127
    %v132 = vshrl.u32 %v128, 9
    %v133 = vshrl.u32 %v129, 9
    %v134 = vshrl.u32 %v130, 9
    %v135 = vshrl.u32 %v131, 9
    %v136 = vor.u32 %v132, 1065353216
    %v137 = vor.u32 %v133, 1065353216
    %v138 = vor.u32 %v134, 1065353216
    %v139 = vor.u32 %v135, 1065353216
    %v144 = vsub.f32 %v136, 1.0
    %v145 = vsub.f32 %v137, 1.0
    %v146 = vsub.f32 %v138, 1.0
    %v147 = vsub.f32 %v139, 1.0
    %v148 = vsub.f32 1.0, %v144
    %v149 = vsub.f32 1.0, %v145
    %v150 = vsub.f32 1.0, %v146
    %v151 = vsub.f32 1.0, %v147
    %v152 = vstv %s58
    %v153 = vxor.u32 %v36, %v152
    %v154 = vxor.u32 %v37, %v152
    %v155 = vxor.u32 %v38, %v152
    %v156 = vxor.u32 %v39, %v152
    %v157 = vshrl.u32 %v153, 16
    %v158 = vshrl.u32 %v154, 16
    %v159 = vshrl.u32 %v155, 16
    %v160 = vshrl.u32 %v156, 16
    %v161 = vxor.u32 %v153, %v157
    %v162 = vxor.u32 %v154, %v158
    %v163 = vxor.u32 %v155, %v159
    %v164 = vxor.u32 %v156, %v160
    %v165 = vmul.u32 %v161, 2146121005
    %v166 = vmul.u32 %v162, 2146121005
    %v167 = vmul.u32 %v163, 2146121005
    %v168 = vmul.u32 %v164, 2146121005
    %v169 = vshrl.u32 %v165, 15
    %v170 = vshrl.u32 %v166, 15
    %v171 = vshrl.u32 %v167, 15
    %v172 = vshrl.u32 %v168, 15
    %v173 = vxor.u32 %v165, %v169
    %v174 = vxor.u32 %v166, %v170
    %v175 = vxor.u32 %v167, %v171
    %v176 = vxor.u32 %v168, %v172
    %v177 = vmul.u32 %v173, 2221713035
    %v178 = vmul.u32 %v174, 2221713035
    %v179 = vmul.u32 %v175, 2221713035
    %v180 = vmul.u32 %v176, 2221713035
    %v181 = vshrl.u32 %v177, 16
    %v182 = vshrl.u32 %v178, 16
    %v183 = vshrl.u32 %v179, 16
    %v184 = vshrl.u32 %v180, 16
    %v185 = vxor.u32 %v177, %v181
    %v186 = vxor.u32 %v178, %v182
    %v187 = vxor.u32 %v179, %v183
    %v188 = vxor.u32 %v180, %v184
    %v189 = vadd.s32 %v185, %v152
    %v190 = vadd.s32 %v186, %v152
    %v191 = vadd.s32 %v187, %v152
    %v192 = vadd.s32 %v188, %v152
    %v193 = vshrl.u32 %v189, 16
    %v194 = vshrl.u32 %v190, 16
    %v195 = vshrl.u32 %v191, 16
    %v196 = vshrl.u32 %v192, 16
    %v197 = vxor.u32 %v189, %v193
    %v198 = vxor.u32 %v190, %v194
    %v199 = vxor.u32 %v191, %v195
    %v200 = vxor.u32 %v192, %v196
    %v201 = vmul.u32 %v197, 2146121005
    %v202 = vmul.u32 %v198, 2146121005
    %v203 = vmul.u32 %v199, 2146121005
    %v204 = vmul.u32 %v200, 2146121005
    %v205 = vshrl.u32 %v201, 15
    %v206 = vshrl.u32 %v202, 15
    %v207 = vshrl.u32 %v203, 15
    %v208 = vshrl.u32 %v204, 15
    %v209 = vxor.u32 %v201, %v205
    %v210 = vxor.u32 %v202, %v206
    %v211 = vxor.u32 %v203, %v207
    %v212 = vxor.u32 %v204, %v208
    %v213 = vmul.u32 %v209, 2221713035
    %v214 = vmul.u32 %v210, 2221713035
    %v215 = vmul.u32 %v211, 2221713035
    %v216 = vmul.u32 %v212, 2221713035
    %v217 = vshrl.u32 %v213, 16
    %v218 = vshrl.u32 %v214, 16
    %v219 = vshrl.u32 %v215, 16
    %v220 = vshrl.u32 %v216, 16
    %v221 = vxor.u32 %v213, %v217
    %v222 = vxor.u32 %v214, %v218
    %v223 = vxor.u32 %v215, %v219
    %v224 = vxor.u32 %v216, %v220
    %v225 = vshrl.u32 %v221, 9
    %v226 = vshrl.u32 %v222, 9
    %v227 = vshrl.u32 %v223, 9
    %v228 = vshrl.u32 %v224, 9
    %v229 = vor.u32 %v225, 1065353216
    %v230 = vor.u32 %v226, 1065353216
    %v231 = vor.u32 %v227, 1065353216
    %v232 = vor.u32 %v228, 1065353216
    %v237 = vsub.f32 %v229, 1.0
    %v238 = vsub.f32 %v230, 1.0
    %v239 = vsub.f32 %v231, 1.0
    %v240 = vsub.f32 %v232, 1.0
    %v241 = vlog2.pop %v148
    %v242 = vmul.f32 %v241, 0.6931472
    %v243 = vlog2.pop %v149
    %v244 = vmul.f32 %v243, 0.6931472
    %v245 = vlog2.pop %v150
    %v246 = vmul.f32 %v245, 0.6931472
    %v247 = vlog2.pop %v151
    %v248 = vmul.f32 %v247, 0.6931472
    %v249 = vmul.f32 %v242, -2.0
    %v250 = vmul.f32 %v244, -2.0
    %v251 = vmul.f32 %v246, -2.0
    %v252 = vmul.f32 %v248, -2.0
    %v253 = vrsqrt.pop %v249
    %v254 = vmul.f32 %v249, %v253
    %vm255 = vcmp.eq.f32.partialorder %v249, inf
    %v256 = vsel %vm255, %v249, %v254
    %vm257 = vcmp.eq.f32.partialorder %v249, 0.0
    %v258 = vand.u32 %v249, 2147483648
    %v259 = vsel %vm257, %v258, %v256
    %v260 = vrsqrt.pop %v250
    %v261 = vmul.f32 %v250, %v260
    %vm262 = vcmp.eq.f32.partialorder %v250, inf
    %v263 = vsel %vm262, %v250, %v261
    %vm264 = vcmp.eq.f32.partialorder %v250, 0.0
    %v265 = vand.u32 %v250, 2147483648
    %v266 = vsel %vm264, %v265, %v263
    %v267 = vrsqrt.pop %v251
    %v268 = vmul.f32 %v251, %v267
    %vm269 = vcmp.eq.f32.partialorder %v251, inf
    %v270 = vsel %vm269, %v251, %v268
    %vm271 = vcmp.eq.f32.partialorder %v251, 0.0
    %v272 = vand.u32 %v251, 2147483648
    %v273 = vsel %vm271, %v272, %v270
    %v274 = vrsqrt.pop %v252
    %v275 = vmul.f32 %v252, %v274
    %vm276 = vcmp.eq.f32.partialorder %v252, inf
    %v277 = vsel %vm276, %v252, %v275
    %vm278 = vcmp.eq.f32.partialorder %v252, 0.0
    %v279 = vand.u32 %v252, 2147483648
    %v280 = vsel %vm278, %v279, %v277
    %v281 = vmul.f32 %v237, 6.2831855
    %v282 = vmul.f32 %v238, 6.2831855
    %v283 = vmul.f32 %v239, 6.2831855
    %v284 = vmul.f32 %v240, 6.2831855
    %v285 = vand.u32 2147483647, %v281
    %vm286 = vcmp.le.f32.partialorder %v285, 0.7853982
    %vm287 = vcmp.lt.s32.totalorder %v281, 0
    %v288 = vand.u32 %v281, 2139095040
    %v289 = vshrl.u32 %v288, 23
    %v290 = vsub.s32 %v289, 127
    %v291 = vand.u32 2147483647, %v281
    %v292 = vand.u32 %v291, 8388607
    %v293 = vor.u32 %v292, 8388608
    %v294 = vsub.s32 0, %v293
    %v295 = vadd.s32 %v290, 1
    %vm296 = vcmp.gt.s32.totalorder %v295, 0
    %v297 = vsel %vm296, %v295, 0
    %v298 = vshrl.u32 %v297, 5
    %v299 = vand.u32 %v297, 31
    %v300 = vsub.s32 32, %v299
    %v301 = vshrl.u32 683565275, %v300
    %v302 = vshll.u32 683565275, %v299
    %v303 = vshrl.u32 2475754826, %v300
    %v304 = vor.u32 %v302, %v303
    %v305 = vshll.u32 2475754826, %v299
    %v306 = vshrl.u32 2131351028, %v300
    %v307 = vor.u32 %v305, %v306
    %v308 = vshll.u32 2131351028, %v299
    %v309 = vshrl.u32 2102212464, %v300
    %v310 = vor.u32 %v308, %v309
    %v311 = vshll.u32 2102212464, %v299
    %v312 = vshrl.u32 920167782, %v300
    %v313 = vor.u32 %v311, %v312
    %v314 = vshll.u32 920167782, %v299
    %v315 = vshrl.u32 1326507024, %v300
    %v316 = vor.u32 %v314, %v315
    %vm317 = vcmp.lt.s32.totalorder %v298, 1
    %vm318 = vcmp.lt.s32.totalorder %v298, 2
    %vm319 = vcmp.lt.s32.totalorder %v298, 3
    %vm320 = vcmp.lt.s32.totalorder %v298, 4
    %v321 = vsel %vm317, %v301, %v304
    %v322 = vsel %vm320, %v310, 2102212464
    %v323 = vsel %vm319, %v307, %v322
    %v324 = vsel %vm318, %v321, %v323
    %v325 = vsel %vm317, %v304, %v307
    %v326 = vsel %vm320, %v313, 920167782
    %v327 = vsel %vm319, %v310, %v326
    %v328 = vsel %vm318, %v325, %v327
    %v329 = vsel %vm317, %v307, %v310
    %v330 = vsel %vm320, %v316, 1326507024
    %v331 = vsel %vm319, %v313, %v330
    %v332 = vsel %vm318, %v329, %v331
    %v333 = vshll.u32 %v293, 8
    %v334 = vmul.u32.u64.compose %v333, %v332
    %v335 = vextract.low.u32 %v334
    %v336 = vextract.high.u32 %v334
    %v337 = vmul.u32.u64.compose %v333, %v328
    %v338 = vextract.low.u32 %v337
    %v339 = vextract.high.u32 %v337
    %v340 = vmul.u32 %v333, %v324
    %v341 = vadd.s32 %v336, %v338
    %vm342 = vc.u32 %v336, %v338
    %v343 = vadd.s32 %v339, 1
    %v344 = vsel %vm342, %v343, %v339
    %v345 = vadd.s32 %v340, %v344
    %v346 = vadd.s32 %v345, 536870912
    %v347 = vshrl.u32 %v346, 30
    %v348 = vshll.u32 %v347, 30
    %v349 = vsub.s32 %v345, %v348
    %vm350 = vcmp.lt.s32.totalorder %v349, 0
    %v351 = vsub.s32 0, %v349
    %v352 = vsel %vm350, %v351, %v349
    %v353 = vclz %v352
    %v354 = vsub.s32 %v353, 2
    %vm355 = vcmp.gt.s32.totalorder 0, %v354
    %v356 = vsel %vm355, 0, %v354
    %v357 = vsub.s32 32, %v356
    %v358 = vshll.u32 %v349, %v356
    %v359 = vshrl.u32 %v341, %v357
    %v360 = vor.u32 %v358, %v359
    %v361 = vsub.s32 4294967266, %v356
    %v362 = vadd.s32 %v361, 127
    %v363 = vshll.u32 %v362, 23
    %v364 = vor.u32 4788187, %v363
    %v365 = vand.u32 2147483647, %v364
    %v367 = vcvt.s32.f32 %v360
    %v368 = vmul.f32 %v367, %v365
    %v369 = vxor.u32 %v368, 2147483648
    %v370 = vsel %vm287, %v369, %v368
    %v371 = vsub.s32 4, %v347
    %v372 = vsel %vm287, %v371, %v347
    %v373 = vsel %vm286, %v281, %v370
    %v374 = vsel %vm286, 0, %v372
    %v375 = vcosq.f32.pop %v373
    %v376 = vsinq.f32.pop %v373
    %vm377 = vweird.f32 %v281
    %v378 = vand.u32 %v374, 3
    %vm379 = vcmp.lt.s32.totalorder %v378, 2
    %vm380 = vcmp.eq.s32.totalorder %v378, 0
    %v381 = vxor.u32 %v376, 2147483648
    %v382 = vsel %vm380, %v375, %v381
    %vm383 = vcmp.eq.s32.totalorder %v378, 2
    %v384 = vxor.u32 %v375, 2147483648
    %v385 = vsel %vm383, %v384, %v376
    %v386 = vsel %vm379, %v382, %v385
    %v387 = vsel %vm377, nan, %v386
    %v388 = vand.u32 2147483647, %v282
    %vm389 = vcmp.le.f32.partialorder %v388, 0.7853982
    %vm390 = vcmp.lt.s32.totalorder %v282, 0
    %v391 = vand.u32 %v282, 2139095040
    %v392 = vshrl.u32 %v391, 23
    %v393 = vsub.s32 %v392, 127
    %v394 = vand.u32 2147483647, %v282
    %v395 = vand.u32 %v394, 8388607
    %v396 = vor.u32 %v395, 8388608
    %v397 = vsub.s32 0, %v396
    %v398 = vadd.s32 %v393, 1
    %vm399 = vcmp.gt.s32.totalorder %v398, 0
    %v400 = vsel %vm399, %v398, 0
    %v401 = vshrl.u32 %v400, 5
    %v402 = vand.u32 %v400, 31
    %v403 = vsub.s32 32, %v402
    %v404 = vshrl.u32 683565275, %v403
    %v405 = vshll.u32 683565275, %v402
    %v406 = vshrl.u32 2475754826, %v403
    %v407 = vor.u32 %v405, %v406
    %v408 = vshll.u32 2475754826, %v402
    %v409 = vshrl.u32 2131351028, %v403
    %v410 = vor.u32 %v408, %v409
    %v411 = vshll.u32 2131351028, %v402
    %v412 = vshrl.u32 2102212464, %v403
    %v413 = vor.u32 %v411, %v412
    %v414 = vshll.u32 2102212464, %v402
    %v415 = vshrl.u32 920167782, %v403
    %v416 = vor.u32 %v414, %v415
    %v417 = vshll.u32 920167782, %v402
    %v418 = vshrl.u32 1326507024, %v403
    %v419 = vor.u32 %v417, %v418
    %vm420 = vcmp.lt.s32.totalorder %v401, 1
    %vm421 = vcmp.lt.s32.totalorder %v401, 2
    %vm422 = vcmp.lt.s32.totalorder %v401, 3
    %vm423 = vcmp.lt.s32.totalorder %v401, 4
    %v424 = vsel %vm420, %v404, %v407
    %v425 = vsel %vm423, %v413, 2102212464
    %v426 = vsel %vm422, %v410, %v425
    %v427 = vsel %vm421, %v424, %v426
    %v428 = vsel %vm420, %v407, %v410
    %v429 = vsel %vm423, %v416, 920167782
    %v430 = vsel %vm422, %v413, %v429
    %v431 = vsel %vm421, %v428, %v430
    %v432 = vsel %vm420, %v410, %v413
    %v433 = vsel %vm423, %v419, 1326507024
    %v434 = vsel %vm422, %v416, %v433
    %v435 = vsel %vm421, %v432, %v434
    %v436 = vshll.u32 %v396, 8
    %v437 = vmul.u32.u64.compose %v436, %v435
    %v438 = vextract.low.u32 %v437
    %v439 = vextract.high.u32 %v437
    %v440 = vmul.u32.u64.compose %v436, %v431
    %v441 = vextract.low.u32 %v440
    %v442 = vextract.high.u32 %v440
    %v443 = vmul.u32 %v436, %v427
    %v444 = vadd.s32 %v439, %v441
    %vm445 = vc.u32 %v439, %v441
    %v446 = vadd.s32 %v442, 1
    %v447 = vsel %vm445, %v446, %v442
    %v448 = vadd.s32 %v443, %v447
    %v449 = vadd.s32 %v448, 536870912
    %v450 = vshrl.u32 %v449, 30
    %v451 = vshll.u32 %v450, 30
    %v452 = vsub.s32 %v448, %v451
    %vm453 = vcmp.lt.s32.totalorder %v452, 0
    %v454 = vsub.s32 0, %v452
    %v455 = vsel %vm453, %v454, %v452
    %v456 = vclz %v455
    %v457 = vsub.s32 %v456, 2
    %vm458 = vcmp.gt.s32.totalorder 0, %v457
    %v459 = vsel %vm458, 0, %v457
    %v460 = vsub.s32 32, %v459
    %v461 = vshll.u32 %v452, %v459
    %v462 = vshrl.u32 %v444, %v460
    %v463 = vor.u32 %v461, %v462
    %v464 = vsub.s32 4294967266, %v459
    %v465 = vadd.s32 %v464, 127
    %v466 = vshll.u32 %v465, 23
    %v467 = vor.u32 4788187, %v466
    %v468 = vand.u32 2147483647, %v467
    %v470 = vcvt.s32.f32 %v463
    %v471 = vmul.f32 %v470, %v468
    %v472 = vxor.u32 %v471, 2147483648
    %v473 = vsel %vm390, %v472, %v471
    %v474 = vsub.s32 4, %v450
    %v475 = vsel %vm390, %v474, %v450
    %v476 = vsel %vm389, %v282, %v473
    %v477 = vsel %vm389, 0, %v475
    %v478 = vcosq.f32.pop %v476
    %v479 = vsinq.f32.pop %v476
    %vm480 = vweird.f32 %v282
    %v481 = vand.u32 %v477, 3
    %vm482 = vcmp.lt.s32.totalorder %v481, 2
    %vm483 = vcmp.eq.s32.totalorder %v481, 0
    %v484 = vxor.u32 %v479, 2147483648
    %v485 = vsel %vm483, %v478, %v484
    %vm486 = vcmp.eq.s32.totalorder %v481, 2
    %v487 = vxor.u32 %v478, 2147483648
    %v488 = vsel %vm486, %v487, %v479
    %v489 = vsel %vm482, %v485, %v488
    %v490 = vsel %vm480, nan, %v489
    %v491 = vand.u32 2147483647, %v283
    %vm492 = vcmp.le.f32.partialorder %v491, 0.7853982
    %vm493 = vcmp.lt.s32.totalorder %v283, 0
    %v494 = vand.u32 %v283, 2139095040
    %v495 = vshrl.u32 %v494, 23
    %v496 = vsub.s32 %v495, 127
    %v497 = vand.u32 2147483647, %v283
    %v498 = vand.u32 %v497, 8388607
    %v499 = vor.u32 %v498, 8388608
    %v500 = vsub.s32 0, %v499
    %v501 = vadd.s32 %v496, 1
    %vm502 = vcmp.gt.s32.totalorder %v501, 0
    %v503 = vsel %vm502, %v501, 0
    %v504 = vshrl.u32 %v503, 5
    %v505 = vand.u32 %v503, 31
    %v506 = vsub.s32 32, %v505
    %v507 = vshrl.u32 683565275, %v506
    %v508 = vshll.u32 683565275, %v505
    %v509 = vshrl.u32 2475754826, %v506
    %v510 = vor.u32 %v508, %v509
    %v511 = vshll.u32 2475754826, %v505
    %v512 = vshrl.u32 2131351028, %v506
    %v513 = vor.u32 %v511, %v512
    %v514 = vshll.u32 2131351028, %v505
    %v515 = vshrl.u32 2102212464, %v506
    %v516 = vor.u32 %v514, %v515
    %v517 = vshll.u32 2102212464, %v505
    %v518 = vshrl.u32 920167782, %v506
    %v519 = vor.u32 %v517, %v518
    %v520 = vshll.u32 920167782, %v505
    %v521 = vshrl.u32 1326507024, %v506
    %v522 = vor.u32 %v520, %v521
    %vm523 = vcmp.lt.s32.totalorder %v504, 1
    %vm524 = vcmp.lt.s32.totalorder %v504, 2
    %vm525 = vcmp.lt.s32.totalorder %v504, 3
    %vm526 = vcmp.lt.s32.totalorder %v504, 4
    %v527 = vsel %vm523, %v507, %v510
    %v528 = vsel %vm526, %v516, 2102212464
    %v529 = vsel %vm525, %v513, %v528
    %v530 = vsel %vm524, %v527, %v529
    %v531 = vsel %vm523, %v510, %v513
    %v532 = vsel %vm526, %v519, 920167782
    %v533 = vsel %vm525, %v516, %v532
    %v534 = vsel %vm524, %v531, %v533
    %v535 = vsel %vm523, %v513, %v516
    %v536 = vsel %vm526, %v522, 1326507024
    %v537 = vsel %vm525, %v519, %v536
    %v538 = vsel %vm524, %v535, %v537
    %v539 = vshll.u32 %v499, 8
    %v540 = vmul.u32.u64.compose %v539, %v538
    %v541 = vextract.low.u32 %v540
    %v542 = vextract.high.u32 %v540
    %v543 = vmul.u32.u64.compose %v539, %v534
    %v544 = vextract.low.u32 %v543
    %v545 = vextract.high.u32 %v543
    %v546 = vmul.u32 %v539, %v530
    %v547 = vadd.s32 %v542, %v544
    %vm548 = vc.u32 %v542, %v544
    %v549 = vadd.s32 %v545, 1
    %v550 = vsel %vm548, %v549, %v545
    %v551 = vadd.s32 %v546, %v550
    %v552 = vadd.s32 %v551, 536870912
    %v553 = vshrl.u32 %v552, 30
    %v554 = vshll.u32 %v553, 30
    %v555 = vsub.s32 %v551, %v554
    %vm556 = vcmp.lt.s32.totalorder %v555, 0
    %v557 = vsub.s32 0, %v555
    %v558 = vsel %vm556, %v557, %v555
    %v559 = vclz %v558
    %v560 = vsub.s32 %v559, 2
    %vm561 = vcmp.gt.s32.totalorder 0, %v560
    %v562 = vsel %vm561, 0, %v560
    %v563 = vsub.s32 32, %v562
    %v564 = vshll.u32 %v555, %v562
    %v565 = vshrl.u32 %v547, %v563
    %v566 = vor.u32 %v564, %v565
    %v567 = vsub.s32 4294967266, %v562
    %v568 = vadd.s32 %v567, 127
    %v569 = vshll.u32 %v568, 23
    %v570 = vor.u32 4788187, %v569
    %v571 = vand.u32 2147483647, %v570
    %v573 = vcvt.s32.f32 %v566
    %v574 = vmul.f32 %v573, %v571
    %v575 = vxor.u32 %v574, 2147483648
    %v576 = vsel %vm493, %v575, %v574
    %v577 = vsub.s32 4, %v553
    %v578 = vsel %vm493, %v577, %v553
    %v579 = vsel %vm492, %v283, %v576
    %v580 = vsel %vm492, 0, %v578
    %v581 = vcosq.f32.pop %v579
    %v582 = vsinq.f32.pop %v579
    %vm583 = vweird.f32 %v283
    %v584 = vand.u32 %v580, 3
    %vm585 = vcmp.lt.s32.totalorder %v584, 2
    %vm586 = vcmp.eq.s32.totalorder %v584, 0
    %v587 = vxor.u32 %v582, 2147483648
    %v588 = vsel %vm586, %v581, %v587
    %vm589 = vcmp.eq.s32.totalorder %v584, 2
    %v590 = vxor.u32 %v581, 2147483648
    %v591 = vsel %vm589, %v590, %v582
    %v592 = vsel %vm585, %v588, %v591
    %v593 = vsel %vm583, nan, %v592
    %v594 = vand.u32 2147483647, %v284
    %vm595 = vcmp.le.f32.partialorder %v594, 0.7853982
    %vm596 = vcmp.lt.s32.totalorder %v284, 0
    %v597 = vand.u32 %v284, 2139095040
    %v598 = vshrl.u32 %v597, 23
    %v599 = vsub.s32 %v598, 127
    %v600 = vand.u32 2147483647, %v284
    %v601 = vand.u32 %v600, 8388607
    %v602 = vor.u32 %v601, 8388608
    %v603 = vsub.s32 0, %v602
    %v604 = vadd.s32 %v599, 1
    %vm605 = vcmp.gt.s32.totalorder %v604, 0
    %v606 = vsel %vm605, %v604, 0
    %v607 = vshrl.u32 %v606, 5
    %v608 = vand.u32 %v606, 31
    %v609 = vsub.s32 32, %v608
    %v610 = vshrl.u32 683565275, %v609
    %v611 = vshll.u32 683565275, %v608
    %v612 = vshrl.u32 2475754826, %v609
    %v613 = vor.u32 %v611, %v612
    %v614 = vshll.u32 2475754826, %v608
    %v615 = vshrl.u32 2131351028, %v609
    %v616 = vor.u32 %v614, %v615
    %v617 = vshll.u32 2131351028, %v608
    %v618 = vshrl.u32 2102212464, %v609
    %v619 = vor.u32 %v617, %v618
    %v620 = vshll.u32 2102212464, %v608
    %v621 = vshrl.u32 920167782, %v609
    %v622 = vor.u32 %v620, %v621
    %v623 = vshll.u32 920167782, %v608
    %v624 = vshrl.u32 1326507024, %v609
    %v625 = vor.u32 %v623, %v624
    %vm626 = vcmp.lt.s32.totalorder %v607, 1
    %vm627 = vcmp.lt.s32.totalorder %v607, 2
    %vm628 = vcmp.lt.s32.totalorder %v607, 3
    %vm629 = vcmp.lt.s32.totalorder %v607, 4
    %v630 = vsel %vm626, %v610, %v613
    %v631 = vsel %vm629, %v619, 2102212464
    %v632 = vsel %vm628, %v616, %v631
    %v633 = vsel %vm627, %v630, %v632
    %v634 = vsel %vm626, %v613, %v616
    %v635 = vsel %vm629, %v622, 920167782
    %v636 = vsel %vm628, %v619, %v635
    %v637 = vsel %vm627, %v634, %v636
    %v638 = vsel %vm626, %v616, %v619
    %v639 = vsel %vm629, %v625, 1326507024
    %v640 = vsel %vm628, %v622, %v639
    %v641 = vsel %vm627, %v638, %v640
    %v642 = vshll.u32 %v602, 8
    %v643 = vmul.u32.u64.compose %v642, %v641
    %v644 = vextract.low.u32 %v643
    %v645 = vextract.high.u32 %v643
    %v646 = vmul.u32.u64.compose %v642, %v637
    %v647 = vextract.low.u32 %v646
    %v648 = vextract.high.u32 %v646
    %v649 = vmul.u32 %v642, %v633
    %v650 = vadd.s32 %v645, %v647
    %vm651 = vc.u32 %v645, %v647
    %v652 = vadd.s32 %v648, 1
    %v653 = vsel %vm651, %v652, %v648
    %v654 = vadd.s32 %v649, %v653
    %v655 = vadd.s32 %v654, 536870912
    %v656 = vshrl.u32 %v655, 30
    %v657 = vshll.u32 %v656, 30
    %v658 = vsub.s32 %v654, %v657
    %vm659 = vcmp.lt.s32.totalorder %v658, 0
    %v660 = vsub.s32 0, %v658
    %v661 = vsel %vm659, %v660, %v658
    %v662 = vclz %v661
    %v663 = vsub.s32 %v662, 2
    %vm664 = vcmp.gt.s32.totalorder 0, %v663
    %v665 = vsel %vm664, 0, %v663
    %v666 = vsub.s32 32, %v665
    %v667 = vshll.u32 %v658, %v665
    %v668 = vshrl.u32 %v650, %v666
    %v669 = vor.u32 %v667, %v668
    %v670 = vsub.s32 4294967266, %v665
    %v671 = vadd.s32 %v670, 127
    %v672 = vshll.u32 %v671, 23
    %v673 = vor.u32 4788187, %v672
    %v674 = vand.u32 2147483647, %v673
    %v676 = vcvt.s32.f32 %v669
    %v677 = vmul.f32 %v676, %v674
    %v678 = vxor.u32 %v677, 2147483648
    %v679 = vsel %vm596, %v678, %v677
    %v680 = vsub.s32 4, %v656
    %v681 = vsel %vm596, %v680, %v656
    %v682 = vsel %vm595, %v284, %v679
    %v683 = vsel %vm595, 0, %v681
    %v684 = vcosq.f32.pop %v682
    %v685 = vsinq.f32.pop %v682
    %vm686 = vweird.f32 %v284
    %v687 = vand.u32 %v683, 3
    %vm688 = vcmp.lt.s32.totalorder %v687, 2
    %vm689 = vcmp.eq.s32.totalorder %v687, 0
    %v690 = vxor.u32 %v685, 2147483648
    %v691 = vsel %vm689, %v684, %v690
    %vm692 = vcmp.eq.s32.totalorder %v687, 2
    %v693 = vxor.u32 %v684, 2147483648
    %v694 = vsel %vm692, %v693, %v685
    %v695 = vsel %vm688, %v691, %v694
    %v696 = vsel %vm686, nan, %v695
    %v697 = vmul.f32 %v259, %v387
    %v698 = vmul.f32 %v266, %v490
    %v699 = vmul.f32 %v273, %v593
    %v700 = vmul.f32 %v280, %v696
    %v701 = vand.u32 2147483647, %v281
    %vm702 = vcmp.le.f32.partialorder %v701, 0.7853982
    %vm703 = vcmp.lt.s32.totalorder %v281, 0
    %v704 = vand.u32 %v281, 2139095040
    %v705 = vshrl.u32 %v704, 23
    %v706 = vsub.s32 %v705, 127
    %v707 = vand.u32 2147483647, %v281
    %v708 = vand.u32 %v707, 8388607
    %v709 = vor.u32 %v708, 8388608
    %v710 = vsub.s32 0, %v709
    %v711 = vadd.s32 %v706, 1
    %vm712 = vcmp.gt.s32.totalorder %v711, 0
    %v713 = vsel %vm712, %v711, 0
    %v714 = vshrl.u32 %v713, 5
    %v715 = vand.u32 %v713, 31
    %v716 = vsub.s32 32, %v715
    %v717 = vshrl.u32 683565275, %v716
    %v718 = vshll.u32 683565275, %v715
    %v719 = vshrl.u32 2475754826, %v716
    %v720 = vor.u32 %v718, %v719
    %v721 = vshll.u32 2475754826, %v715
    %v722 = vshrl.u32 2131351028, %v716
    %v723 = vor.u32 %v721, %v722
    %v724 = vshll.u32 2131351028, %v715
    %v725 = vshrl.u32 2102212464, %v716
    %v726 = vor.u32 %v724, %v725
    %v727 = vshll.u32 2102212464, %v715
    %v728 = vshrl.u32 920167782, %v716
    %v729 = vor.u32 %v727, %v728
    %v730 = vshll.u32 920167782, %v715
    %v731 = vshrl.u32 1326507024, %v716
    %v732 = vor.u32 %v730, %v731
    %vm733 = vcmp.lt.s32.totalorder %v714, 1
    %vm734 = vcmp.lt.s32.totalorder %v714, 2
    %vm735 = vcmp.lt.s32.totalorder %v714, 3
    %vm736 = vcmp.lt.s32.totalorder %v714, 4
    %v737 = vsel %vm733, %v717, %v720
    %v738 = vsel %vm736, %v726, 2102212464
    %v739 = vsel %vm735, %v723, %v738
    %v740 = vsel %vm734, %v737, %v739
    %v741 = vsel %vm733, %v720, %v723
    %v742 = vsel %vm736, %v729, 920167782
    %v743 = vsel %vm735, %v726, %v742
    %v744 = vsel %vm734, %v741, %v743
    %v745 = vsel %vm733, %v723, %v726
    %v746 = vsel %vm736, %v732, 1326507024
    %v747 = vsel %vm735, %v729, %v746
    %v748 = vsel %vm734, %v745, %v747
    %v749 = vshll.u32 %v709, 8
    %v750 = vmul.u32.u64.compose %v749, %v748
    %v751 = vextract.low.u32 %v750
    %v752 = vextract.high.u32 %v750
    %v753 = vmul.u32.u64.compose %v749, %v744
    %v754 = vextract.low.u32 %v753
    %v755 = vextract.high.u32 %v753
    %v756 = vmul.u32 %v749, %v740
    %v757 = vadd.s32 %v752, %v754
    %vm758 = vc.u32 %v752, %v754
    %v759 = vadd.s32 %v755, 1
    %v760 = vsel %vm758, %v759, %v755
    %v761 = vadd.s32 %v756, %v760
    %v762 = vadd.s32 %v761, 536870912
    %v763 = vshrl.u32 %v762, 30
    %v764 = vshll.u32 %v763, 30
    %v765 = vsub.s32 %v761, %v764
    %vm766 = vcmp.lt.s32.totalorder %v765, 0
    %v767 = vsub.s32 0, %v765
    %v768 = vsel %vm766, %v767, %v765
    %v769 = vclz %v768
    %v770 = vsub.s32 %v769, 2
    %vm771 = vcmp.gt.s32.totalorder 0, %v770
    %v772 = vsel %vm771, 0, %v770
    %v773 = vsub.s32 32, %v772
    %v774 = vshll.u32 %v765, %v772
    %v775 = vshrl.u32 %v757, %v773
    %v776 = vor.u32 %v774, %v775
    %v777 = vsub.s32 4294967266, %v772
    %v778 = vadd.s32 %v777, 127
    %v779 = vshll.u32 %v778, 23
    %v780 = vor.u32 4788187, %v779
    %v781 = vand.u32 2147483647, %v780
    %v783 = vcvt.s32.f32 %v776
    %v784 = vmul.f32 %v783, %v781
    %v785 = vxor.u32 %v784, 2147483648
    %v786 = vsel %vm703, %v785, %v784
    %v787 = vsub.s32 4, %v763
    %v788 = vsel %vm703, %v787, %v763
    %v789 = vsel %vm702, %v281, %v786
    %v790 = vsel %vm702, 0, %v788
    %v791 = vcosq.f32.pop %v789
    %v792 = vsinq.f32.pop %v789
    %vm793 = vweird.f32 %v281
    %v794 = vadd.s32 %v790, 3
    %v795 = vand.u32 %v794, 3
    %vm796 = vcmp.lt.s32.totalorder %v795, 2
    %vm797 = vcmp.eq.s32.totalorder %v795, 0
    %v798 = vxor.u32 %v792, 2147483648
    %v799 = vsel %vm797, %v791, %v798
    %vm800 = vcmp.eq.s32.totalorder %v795, 2
    %v801 = vxor.u32 %v791, 2147483648
    %v802 = vsel %vm800, %v801, %v792
    %v803 = vsel %vm796, %v799, %v802
    %v804 = vsel %vm793, nan, %v803
    %v805 = vand.u32 2147483647, %v282
    %vm806 = vcmp.le.f32.partialorder %v805, 0.7853982
    %vm807 = vcmp.lt.s32.totalorder %v282, 0
    %v808 = vand.u32 %v282, 2139095040
    %v809 = vshrl.u32 %v808, 23
    %v810 = vsub.s32 %v809, 127
    %v811 = vand.u32 2147483647, %v282
    %v812 = vand.u32 %v811, 8388607
    %v813 = vor.u32 %v812, 8388608
    %v814 = vsub.s32 0, %v813
    %v815 = vadd.s32 %v810, 1
    %vm816 = vcmp.gt.s32.totalorder %v815, 0
    %v817 = vsel %vm816, %v815, 0
    %v818 = vshrl.u32 %v817, 5
    %v819 = vand.u32 %v817, 31
    %v820 = vsub.s32 32, %v819
    %v821 = vshrl.u32 683565275, %v820
    %v822 = vshll.u32 683565275, %v819
    %v823 = vshrl.u32 2475754826, %v820
    %v824 = vor.u32 %v822, %v823
    %v825 = vshll.u32 2475754826, %v819
    %v826 = vshrl.u32 2131351028, %v820
    %v827 = vor.u32 %v825, %v826
    %v828 = vshll.u32 2131351028, %v819
    %v829 = vshrl.u32 2102212464, %v820
    %v830 = vor.u32 %v828, %v829
    %v831 = vshll.u32 2102212464, %v819
    %v832 = vshrl.u32 920167782, %v820
    %v833 = vor.u32 %v831, %v832
    %v834 = vshll.u32 920167782, %v819
    %v835 = vshrl.u32 1326507024, %v820
    %v836 = vor.u32 %v834, %v835
    %vm837 = vcmp.lt.s32.totalorder %v818, 1
    %vm838 = vcmp.lt.s32.totalorder %v818, 2
    %vm839 = vcmp.lt.s32.totalorder %v818, 3
    %vm840 = vcmp.lt.s32.totalorder %v818, 4
    %v841 = vsel %vm837, %v821, %v824
    %v842 = vsel %vm840, %v830, 2102212464
    %v843 = vsel %vm839, %v827, %v842
    %v844 = vsel %vm838, %v841, %v843
    %v845 = vsel %vm837, %v824, %v827
    %v846 = vsel %vm840, %v833, 920167782
    %v847 = vsel %vm839, %v830, %v846
    %v848 = vsel %vm838, %v845, %v847
    %v849 = vsel %vm837, %v827, %v830
    %v850 = vsel %vm840, %v836, 1326507024
    %v851 = vsel %vm839, %v833, %v850
    %v852 = vsel %vm838, %v849, %v851
    %v853 = vshll.u32 %v813, 8
    %v854 = vmul.u32.u64.compose %v853, %v852
    %v855 = vextract.low.u32 %v854
    %v856 = vextract.high.u32 %v854
    %v857 = vmul.u32.u64.compose %v853, %v848
    %v858 = vextract.low.u32 %v857
    %v859 = vextract.high.u32 %v857
    %v860 = vmul.u32 %v853, %v844
    %v861 = vadd.s32 %v856, %v858
    %vm862 = vc.u32 %v856, %v858
    %v863 = vadd.s32 %v859, 1
    %v864 = vsel %vm862, %v863, %v859
    %v865 = vadd.s32 %v860, %v864
    %v866 = vadd.s32 %v865, 536870912
    %v867 = vshrl.u32 %v866, 30
    %v868 = vshll.u32 %v867, 30
    %v869 = vsub.s32 %v865, %v868
    %vm870 = vcmp.lt.s32.totalorder %v869, 0
    %v871 = vsub.s32 0, %v869
    %v872 = vsel %vm870, %v871, %v869
    %v873 = vclz %v872
    %v874 = vsub.s32 %v873, 2
    %vm875 = vcmp.gt.s32.totalorder 0, %v874
    %v876 = vsel %vm875, 0, %v874
    %v877 = vsub.s32 32, %v876
    %v878 = vshll.u32 %v869, %v876
    %v879 = vshrl.u32 %v861, %v877
    %v880 = vor.u32 %v878, %v879
    %v881 = vsub.s32 4294967266, %v876
    %v882 = vadd.s32 %v881, 127
    %v883 = vshll.u32 %v882, 23
    %v884 = vor.u32 4788187, %v883
    %v885 = vand.u32 2147483647, %v884
    %v887 = vcvt.s32.f32 %v880
    %v888 = vmul.f32 %v887, %v885
    %v889 = vxor.u32 %v888, 2147483648
    %v890 = vsel %vm807, %v889, %v888
    %v891 = vsub.s32 4, %v867
    %v892 = vsel %vm807, %v891, %v867
    %v893 = vsel %vm806, %v282, %v890
    %v894 = vsel %vm806, 0, %v892
    %v895 = vcosq.f32.pop %v893
    %v896 = vsinq.f32.pop %v893
    %vm897 = vweird.f32 %v282
    %v898 = vadd.s32 %v894, 3
    %v899 = vand.u32 %v898, 3
    %vm900 = vcmp.lt.s32.totalorder %v899, 2
    %vm901 = vcmp.eq.s32.totalorder %v899, 0
    %v902 = vxor.u32 %v896, 2147483648
    %v903 = vsel %vm901, %v895, %v902
    %vm904 = vcmp.eq.s32.totalorder %v899, 2
    %v905 = vxor.u32 %v895, 2147483648
    %v906 = vsel %vm904, %v905, %v896
    %v907 = vsel %vm900, %v903, %v906
    %v908 = vsel %vm897, nan, %v907
    %v909 = vand.u32 2147483647, %v283
    %vm910 = vcmp.le.f32.partialorder %v909, 0.7853982
    %vm911 = vcmp.lt.s32.totalorder %v283, 0
    %v912 = vand.u32 %v283, 2139095040
    %v913 = vshrl.u32 %v912, 23
    %v914 = vsub.s32 %v913, 127
    %v915 = vand.u32 2147483647, %v283
    %v916 = vand.u32 %v915, 8388607
    %v917 = vor.u32 %v916, 8388608
    %v918 = vsub.s32 0, %v917
    %v919 = vadd.s32 %v914, 1
    %vm920 = vcmp.gt.s32.totalorder %v919, 0
    %v921 = vsel %vm920, %v919, 0
    %v922 = vshrl.u32 %v921, 5
    %v923 = vand.u32 %v921, 31
    %v924 = vsub.s32 32, %v923
    %v925 = vshrl.u32 683565275, %v924
    %v926 = vshll.u32 683565275, %v923
    %v927 = vshrl.u32 2475754826, %v924
    %v928 = vor.u32 %v926, %v927
    %v929 = vshll.u32 2475754826, %v923
    %v930 = vshrl.u32 2131351028, %v924
    %v931 = vor.u32 %v929, %v930
    %v932 = vshll.u32 2131351028, %v923
    %v933 = vshrl.u32 2102212464, %v924
    %v934 = vor.u32 %v932, %v933
    %v935 = vshll.u32 2102212464, %v923
    %v936 = vshrl.u32 920167782, %v924
    %v937 = vor.u32 %v935, %v936
    %v938 = vshll.u32 920167782, %v923
    %v939 = vshrl.u32 1326507024, %v924
    %v940 = vor.u32 %v938, %v939
    %vm941 = vcmp.lt.s32.totalorder %v922, 1
    %vm942 = vcmp.lt.s32.totalorder %v922, 2
    %vm943 = vcmp.lt.s32.totalorder %v922, 3
    %vm944 = vcmp.lt.s32.totalorder %v922, 4
    %v945 = vsel %vm941, %v925, %v928
    %v946 = vsel %vm944, %v934, 2102212464
    %v947 = vsel %vm943, %v931, %v946
    %v948 = vsel %vm942, %v945, %v947
    %v949 = vsel %vm941, %v928, %v931
    %v950 = vsel %vm944, %v937, 920167782
    %v951 = vsel %vm943, %v934, %v950
    %v952 = vsel %vm942, %v949, %v951
    %v953 = vsel %vm941, %v931, %v934
    %v954 = vsel %vm944, %v940, 1326507024
    %v955 = vsel %vm943, %v937, %v954
    %v956 = vsel %vm942, %v953, %v955
    %v957 = vshll.u32 %v917, 8
    %v958 = vmul.u32.u64.compose %v957, %v956
    %v959 = vextract.low.u32 %v958
    %v960 = vextract.high.u32 %v958
    %v961 = vmul.u32.u64.compose %v957, %v952
    %v962 = vextract.low.u32 %v961
    %v963 = vextract.high.u32 %v961
    %v964 = vmul.u32 %v957, %v948
    %v965 = vadd.s32 %v960, %v962
    %vm966 = vc.u32 %v960, %v962
    %v967 = vadd.s32 %v963, 1
    %v968 = vsel %vm966, %v967, %v963
    %v969 = vadd.s32 %v964, %v968
    %v970 = vadd.s32 %v969, 536870912
    %v971 = vshrl.u32 %v970, 30
    %v972 = vshll.u32 %v971, 30
    %v973 = vsub.s32 %v969, %v972
    %vm974 = vcmp.lt.s32.totalorder %v973, 0
    %v975 = vsub.s32 0, %v973
    %v976 = vsel %vm974, %v975, %v973
    %v977 = vclz %v976
    %v978 = vsub.s32 %v977, 2
    %vm979 = vcmp.gt.s32.totalorder 0, %v978
    %v980 = vsel %vm979, 0, %v978
    %v981 = vsub.s32 32, %v980
    %v982 = vshll.u32 %v973, %v980
    %v983 = vshrl.u32 %v965, %v981
    %v984 = vor.u32 %v982, %v983
    %v985 = vsub.s32 4294967266, %v980
    %v986 = vadd.s32 %v985, 127
    %v987 = vshll.u32 %v986, 23
    %v988 = vor.u32 4788187, %v987
    %v989 = vand.u32 2147483647, %v988
    %v991 = vcvt.s32.f32 %v984
    %v992 = vmul.f32 %v991, %v989
    %v993 = vxor.u32 %v992, 2147483648
    %v994 = vsel %vm911, %v993, %v992
    %v995 = vsub.s32 4, %v971
    %v996 = vsel %vm911, %v995, %v971
    %v997 = vsel %vm910, %v283, %v994
    %v998 = vsel %vm910, 0, %v996
    %v999 = vcosq.f32.pop %v997
    %v1000 = vsinq.f32.pop %v997
    %vm1001 = vweird.f32 %v283
    %v1002 = vadd.s32 %v998, 3
    %v1003 = vand.u32 %v1002, 3
    %vm1004 = vcmp.lt.s32.totalorder %v1003, 2
    %vm1005 = vcmp.eq.s32.totalorder %v1003, 0
    %v1006 = vxor.u32 %v1000, 2147483648
    %v1007 = vsel %vm1005, %v999, %v1006
    %vm1008 = vcmp.eq.s32.totalorder %v1003, 2
    %v1009 = vxor.u32 %v999, 2147483648
    %v1010 = vsel %vm1008, %v1009, %v1000
    %v1011 = vsel %vm1004, %v1007, %v1010
    %v1012 = vsel %vm1001, nan, %v1011
    %v1013 = vand.u32 2147483647, %v284
    %vm1014 = vcmp.le.f32.partialorder %v1013, 0.7853982
    %vm1015 = vcmp.lt.s32.totalorder %v284, 0
    %v1016 = vand.u32 %v284, 2139095040
    %v1017 = vshrl.u32 %v1016, 23
    %v1018 = vsub.s32 %v1017, 127
    %v1019 = vand.u32 2147483647, %v284
    %v1020 = vand.u32 %v1019, 8388607
    %v1021 = vor.u32 %v1020, 8388608
    %v1022 = vsub.s32 0, %v1021
    %v1023 = vadd.s32 %v1018, 1
    %vm1024 = vcmp.gt.s32.totalorder %v1023, 0
    %v1025 = vsel %vm1024, %v1023, 0
    %v1026 = vshrl.u32 %v1025, 5
    %v1027 = vand.u32 %v1025, 31
    %v1028 = vsub.s32 32, %v1027
    %v1029 = vshrl.u32 683565275, %v1028
    %v1030 = vshll.u32 683565275, %v1027
    %v1031 = vshrl.u32 2475754826, %v1028
    %v1032 = vor.u32 %v1030, %v1031
    %v1033 = vshll.u32 2475754826, %v1027
    %v1034 = vshrl.u32 2131351028, %v1028
    %v1035 = vor.u32 %v1033, %v1034
    %v1036 = vshll.u32 2131351028, %v1027
    %v1037 = vshrl.u32 2102212464, %v1028
    %v1038 = vor.u32 %v1036, %v1037
    %v1039 = vshll.u32 2102212464, %v1027
    %v1040 = vshrl.u32 920167782, %v1028
    %v1041 = vor.u32 %v1039, %v1040
    %v1042 = vshll.u32 920167782, %v1027
    %v1043 = vshrl.u32 1326507024, %v1028
    %v1044 = vor.u32 %v1042, %v1043
    %vm1045 = vcmp.lt.s32.totalorder %v1026, 1
    %vm1046 = vcmp.lt.s32.totalorder %v1026, 2
    %vm1047 = vcmp.lt.s32.totalorder %v1026, 3
    %vm1048 = vcmp.lt.s32.totalorder %v1026, 4
    %v1049 = vsel %vm1045, %v1029, %v1032
    %v1050 = vsel %vm1048, %v1038, 2102212464
    %v1051 = vsel %vm1047, %v1035, %v1050
    %v1052 = vsel %vm1046, %v1049, %v1051
    %v1053 = vsel %vm1045, %v1032, %v1035
    %v1054 = vsel %vm1048, %v1041, 920167782
    %v1055 = vsel %vm1047, %v1038, %v1054
    %v1056 = vsel %vm1046, %v1053, %v1055
    %v1057 = vsel %vm1045, %v1035, %v1038
    %v1058 = vsel %vm1048, %v1044, 1326507024
    %v1059 = vsel %vm1047, %v1041, %v1058
    %v1060 = vsel %vm1046, %v1057, %v1059
    %v1061 = vshll.u32 %v1021, 8
    %v1062 = vmul.u32.u64.compose %v1061, %v1060
    %v1063 = vextract.low.u32 %v1062
    %v1064 = vextract.high.u32 %v1062
    %v1065 = vmul.u32.u64.compose %v1061, %v1056
    %v1066 = vextract.low.u32 %v1065
    %v1067 = vextract.high.u32 %v1065
    %v1068 = vmul.u32 %v1061, %v1052
    %v1069 = vadd.s32 %v1064, %v1066
    %vm1070 = vc.u32 %v1064, %v1066
    %v1071 = vadd.s32 %v1067, 1
    %v1072 = vsel %vm1070, %v1071, %v1067
    %v1073 = vadd.s32 %v1068, %v1072
    %v1074 = vadd.s32 %v1073, 536870912
    %v1075 = vshrl.u32 %v1074, 30
    %v1076 = vshll.u32 %v1075, 30
    %v1077 = vsub.s32 %v1073, %v1076
    %vm1078 = vcmp.lt.s32.totalorder %v1077, 0
    %v1079 = vsub.s32 0, %v1077
    %v1080 = vsel %vm1078, %v1079, %v1077
    %v1081 = vclz %v1080
    %v1082 = vsub.s32 %v1081, 2
    %vm1083 = vcmp.gt.s32.totalorder 0, %v1082
    %v1084 = vsel %vm1083, 0, %v1082
    %v1085 = vsub.s32 32, %v1084
    %v1086 = vshll.u32 %v1077, %v1084
    %v1087 = vshrl.u32 %v1069, %v1085
    %v1088 = vor.u32 %v1086, %v1087
    %v1089 = vsub.s32 4294967266, %v1084
    %v1090 = vadd.s32 %v1089, 127
    %v1091 = vshll.u32 %v1090, 23
    %v1092 = vor.u32 4788187, %v1091
    %v1093 = vand.u32 2147483647, %v1092
    %v1095 = vcvt.s32.f32 %v1088
    %v1096 = vmul.f32 %v1095, %v1093
    %v1097 = vxor.u32 %v1096, 2147483648
    %v1098 = vsel %vm1015, %v1097, %v1096
    %v1099 = vsub.s32 4, %v1075
    %v1100 = vsel %vm1015, %v1099, %v1075
    %v1101 = vsel %vm1014, %v284, %v1098
    %v1102 = vsel %vm1014, 0, %v1100
    %v1103 = vcosq.f32.pop %v1101
    %v1104 = vsinq.f32.pop %v1101
    %vm1105 = vweird.f32 %v284
    %v1106 = vadd.s32 %v1102, 3
    %v1107 = vand.u32 %v1106, 3
    %vm1108 = vcmp.lt.s32.totalorder %v1107, 2
    %vm1109 = vcmp.eq.s32.totalorder %v1107, 0
    %v1110 = vxor.u32 %v1104, 2147483648
    %v1111 = vsel %vm1109, %v1103, %v1110
    %vm1112 = vcmp.eq.s32.totalorder %v1107, 2
    %v1113 = vxor.u32 %v1103, 2147483648
    %v1114 = vsel %vm1112, %v1113, %v1104
    %v1115 = vsel %vm1108, %v1111, %v1114
    %v1116 = vsel %vm1105, nan, %v1115
    %v1117 = vmul.f32 %v259, %v804
    %v1118 = vmul.f32 %v266, %v908
    %v1119 = vmul.f32 %v273, %v1012
    %v1120 = vmul.f32 %v280, %v1116
    %v1121 = vld [vmem:[#allocation3] sm:$0xf]
    %v1122 = vld [vmem:[#allocation3 + $0x8] sm:$0xf]
    %v1123 = vld [vmem:[#allocation3 + $0x10] sm:$0xf]
    %v1124 = vld [vmem:[#allocation3 + $0x18] sm:$0xf]
    %v1125 = vmul.f32 %v697, 0.1
    %v1126 = vmul.f32 %v698, 0.1
    %v1127 = vmul.f32 %v699, 0.1
    %v1128 = vmul.f32 %v700, 0.1
    %v1129 = vadd.f32 %v1121, %v1125
    %v1130 = vadd.f32 %v1122, %v1126
    %v1131 = vadd.f32 %v1123, %v1127
    %v1132 = vadd.f32 %v1124, %v1128
    %1133 = vst [vmem:[#allocation6] sm:$0xf] %v1129
    %1134 = vst [vmem:[#allocation6 + $0x8] sm:$0xf] %v1130
    %1135 = vst [vmem:[#allocation6 + $0x10] sm:$0xf] %v1131
    %1136 = vst [vmem:[#allocation6 + $0x18] sm:$0xf] %v1132
    %v1137 = vld [vmem:[#allocation3] sm:$0xf0]
    %v1138 = vld [vmem:[#allocation3 + $0x8] sm:$0xf0]
    %v1139 = vld [vmem:[#allocation3 + $0x10] sm:$0xf0]
    %v1140 = vld [vmem:[#allocation3 + $0x18] sm:$0xf0]
    %v1141 = vmul.f32 %v1117, 0.1
    %v1142 = vmul.f32 %v1118, 0.1
    %v1143 = vmul.f32 %v1119, 0.1
    %v1144 = vmul.f32 %v1120, 0.1
    %v1149 = vrot.slane %v1141, 4
    %v1150 = vrot.slane %v1142, 4
    %v1151 = vrot.slane %v1143, 4
    %v1152 = vrot.slane %v1144, 4
    %v1157 = vadd.f32 %v1137, %v1149
    %v1158 = vadd.f32 %v1138, %v1150
    %v1159 = vadd.f32 %v1139, %v1151
    %v1160 = vadd.f32 %v1140, %v1152
    %1161 = vst [vmem:[#allocation6] sm:$0xf0] %v1157
    %1162 = vst [vmem:[#allocation6 + $0x8] sm:$0xf0] %v1158
    %1163 = vst [vmem:[#allocation6 + $0x10] sm:$0xf0] %v1159
    %1164 = vst [vmem:[#allocation6 + $0x18] sm:$0xf0] %v1160
    // Predicated region
    $region14: #{tpu_custom_call.1} parent=1 // pred_check
      _
    $region15: #{tpu_custom_call.1} parent=1 // pred_check_branch
      %1166 = sbr.rel (0) target = $region17
    $region16: #{tpu_custom_call.1} parent=1 // pred_region
      %s1168 = ssub.s32 512, 512
      %1169 = vsyncadd [#allocation5], %s1168
      %s1171 = sshll.u32 [#allocation6], 4
      %s1172 = int_to_ptr.vmem [resolvable:$true] %s1171
      %1174 = dma.vmem_to_hbm [thread:$0]  %s1172, 512, %s2, [#allocation5]
    $region17: #{tpu_custom_call.1} parent=1 // pred_fallthru
      _
    // Predicated region
    $region18: #{tpu_custom_call.1} parent=1 // pred_check
      _
    $region19: #{tpu_custom_call.1} parent=1 // pred_check_branch
      %1176 = sbr.rel (0) target = $region21
    $region20: #{tpu_custom_call.1} parent=1 // pred_region
      %1177 = dma.done [#allocation5], 512
    $region21: #{tpu_custom_call.1} parent=1 // pred_fallthru
      _
    %1178 = vsyncpa [#allocation4], 1
    %1179 = vsyncpa [#allocation5], 1

</llo_original>
